<compile_context>
chip_gen: v6e
topology: v6e:2x2x1
jax: 0.10.0
libtpu: 0.0.40
codegen_flags: <defaults>
</compile_context>

<pallas_src>
import functools

import jax
import jax.numpy as jnp
from jax.experimental import pallas as pl
from jax.experimental.pallas import tpu as pltpu

_LANES = 128


def _round_up(n: int, m: int) -> int:
    return ((n + m - 1) // m) * m


def policy_net_kernel(x_ref, w1_ref, b1_ref, w2_ref, b2_ref, w3_ref, b3_ref,
                      o_ref, *, out_dim):
    # x tile: [tb, in_dim] f32.  Weights bf16 (MXU-native), biases f32.
    x = x_ref[...].astype(jnp.bfloat16)

    # fc1 + relu   (bf16 MXU operands, f32 accumulate; elementwise in f32)
    h1 = jnp.dot(x, w1_ref[...], preferred_element_type=jnp.float32)
    h1 = jnp.maximum(h1 + b1_ref[...], 0.0)

    # fc2 + relu
    h2 = jnp.dot(h1.astype(jnp.bfloat16), w2_ref[...],
                 preferred_element_type=jnp.float32)
    h2 = jnp.maximum(h2 + b2_ref[...], 0.0)

    # fc3 + relu   (fc3 columns lane-padded to a multiple of 128 -- VMEM only)
    h3 = jnp.dot(h2.astype(jnp.bfloat16), w3_ref[...],
                 preferred_element_type=jnp.float32)
    h3 = jnp.maximum(h3 + b3_ref[...], 0.0)

    # Mask padded logit lanes to -inf so they contribute exp(-inf) = 0 to the
    # softmax denominator.  (Static no-op if out_dim is already lane-dense.)
    out_pad = h3.shape[-1]
    if out_dim < out_pad:
        lane = jax.lax.broadcasted_iota(jnp.int32, h3.shape, dimension=1)
        h3 = jnp.where(lane < out_dim, h3, -jnp.inf)

    # Numerically stable softmax; exact divide (rows sum to 1 at f32 precision).
    m = jnp.max(h3, axis=-1, keepdims=True)
    e = jnp.exp(h3 - m)
    denom = jnp.sum(e, axis=-1, keepdims=True)
    probs = e / denom

    # Only the real columns leave VMEM.
    o_ref[...] = probs[:, :out_dim]


def prepare_params(params):
    """One-time conversion of f32 params into kernel-ready form.

    Call once per parameter update, NOT per forward call, so the forward
    wrapper has zero extra HBM passes.  Weight layout is
    [in_features, out_features] (transpose of nn.Linear) so the kernel does
    plain x @ W + b.  bf16 weights are a deliberate MXU-friendly deviation
    from the f32 PyTorch module (accumulation stays f32).
    """
    out_dim = params["w3"].shape[1]
    out_pad = _round_up(out_dim, _LANES)
    w3 = jnp.pad(params["w3"], ((0, 0), (0, out_pad - out_dim)))
    b3 = jnp.pad(params["b3"], ((0, 0), (0, out_pad - out_dim)))
    return {
        "w1": params["w1"].astype(jnp.bfloat16),
        "b1": params["b1"].astype(jnp.float32),
        "w2": params["w2"].astype(jnp.bfloat16),
        "b2": params["b2"].astype(jnp.float32),
        "w3": w3.astype(jnp.bfloat16),
        "b3": b3.astype(jnp.float32),
        "out_dim": out_dim,  # static python int
    }


def policy_net_forward(x, prep, *, block_rows: int = 4096):
    """x: [B, in_dim] float32; prep: output of prepare_params()."""
    B, in_dim = x.shape
    out_dim = prep["out_dim"]
    out_pad = prep["w3"].shape[1]

    # Batch tile.  Small batches run as one full-array block (always legal even
    # when B is not a multiple of 8); large batches use a big sublane-aligned
    # tile, shrunk so the grid keeps >= 4 steps for megacore + overlap.
    if B <= block_rows:
        tb = B
    else:
        tb = min(_round_up(block_rows, 8), _round_up(pl.cdiv(B, 4), 8))
    grid = (pl.cdiv(B, tb),)

    resident = lambda shape: pl.BlockSpec(shape, lambda i: (0, 0))

    # Advisory cost estimate (true limiter is HBM bytes, not FLOPs).
    w_bytes = sum(int(prep[k].size) * int(prep[k].dtype.itemsize)
                  for k in ("w1", "b1", "w2", "b2", "w3", "b3"))
    cost = pl.CostEstimate(
        flops=2 * B * (in_dim * 128 + 128 * 32 + 32 * out_pad),
        transcendentals=B * out_pad,
        bytes_accessed=B * in_dim * 4 + B * out_dim * 4 + w_bytes,
    )

    # Raise scoped VMEM only when the tile is big enough to need it
    # (48 MiB fits v5e/v6e 128 MiB and v7x 64 MiB physical with headroom).
    vmem_limit = 48 * 1024 * 1024 if tb >= 2048 else None

    out = pl.pallas_call(
        functools.partial(policy_net_kernel, out_dim=out_dim),
        out_shape=jax.ShapeDtypeStruct((B, out_dim), jnp.float32),
        grid=grid,
        in_specs=[
            pl.BlockSpec((tb, in_dim), lambda i: (i, 0)),   # x tile per step
            resident(prep["w1"].shape), resident(prep["b1"].shape),
            resident(prep["w2"].shape), resident(prep["b2"].shape),
            resident(prep["w3"].shape), resident(prep["b3"].shape),
        ],
        out_specs=pl.BlockSpec((tb, out_dim), lambda i: (i, 0)),
        compiler_params=pltpu.CompilerParams(
            dimension_semantics=("parallel",),
            vmem_limit_bytes=vmem_limit),
        cost_estimate=cost,
    )(x, prep["w1"], prep["b1"], prep["w2"], prep["b2"],
      prep["w3"], prep["b3"])

    return out


def init_params(key, in_dim, out_dim):
    """Deterministic synthetic parameters (PyTorch-Linear-like uniform init).

    Weights are stored [in_features, out_features] (transpose of nn.Linear's
    layout) so the kernel does plain x @ W + b.
    """
    ks = jax.random.split(key, 6)

    def linear(kw, kb, fan_in, fan_out):
        bound = 1.0 / jnp.sqrt(jnp.float32(fan_in))
        w = jax.random.uniform(kw, (fan_in, fan_out), jnp.float32, -bound, bound)
        b = jax.random.uniform(kb, (1, fan_out), jnp.float32, -bound, bound)
        return w, b

    w1, b1 = linear(ks[0], ks[1], in_dim, 128)
    w2, b2 = linear(ks[2], ks[3], 128, 32)
    w3, b3 = linear(ks[4], ks[5], 32, out_dim)
    return {"w1": w1, "b1": b1, "w2": w2, "b2": b2, "w3": w3, "b3": b3}


if __name__ == "__main__":
    IN_DIM, OUT_DIM, BATCH = 16, 8, 4

    key = jax.random.PRNGKey(0)
    kx, kp = jax.random.split(key)
    x = jax.random.normal(kx, (BATCH, IN_DIM), dtype=jnp.float32)
    params = init_params(kp, IN_DIM, OUT_DIM)
    prep = prepare_params(params)        # one-time, not per forward call

    probs = policy_net_forward(x, prep)
    jax.block_until_ready(probs)

    # Reference 1: same math as the kernel (bf16 MXU operands, f32 accumulate).
    def ref_bf16(x, p):
        bf = jnp.bfloat16
        h1 = jnp.maximum(
            jnp.dot(x.astype(bf), p["w1"].astype(bf),
                    preferred_element_type=jnp.float32) + p["b1"], 0.0)
        h2 = jnp.maximum(
            jnp.dot(h1.astype(bf), p["w2"].astype(bf),
                    preferred_element_type=jnp.float32) + p["b2"], 0.0)
        h3 = jnp.maximum(
            jnp.dot(h2.astype(bf), p["w3"].astype(bf),
                    preferred_element_type=jnp.float32) + p["b3"], 0.0)
        return jax.nn.softmax(h3, axis=-1)

    # Reference 2: full-f32 math (the exact PyTorch module semantics).
    def ref_f32(x, p):
        h1 = jnp.maximum(x @ p["w1"] + p["b1"], 0.0)
        h2 = jnp.maximum(h1 @ p["w2"] + p["b2"], 0.0)
        h3 = jnp.maximum(h2 @ p["w3"] + p["b3"], 0.0)
        return jax.nn.softmax(h3, axis=-1)

    assert probs.shape == (BATCH, OUT_DIM)
    assert jnp.allclose(probs, ref_bf16(x, params), atol=2e-3), \
        "mismatch vs bf16-matched reference"
    assert jnp.allclose(probs, ref_f32(x, params), atol=5e-2), \
        "mismatch vs f32 reference"
    # Exact softmax divide in the kernel -> rows sum to 1 at f32 precision.
    assert jnp.allclose(jnp.sum(probs, axis=-1), 1.0, atol=1e-5)

    print("KERNEL_OK")
</pallas_src>

<mosaic_0001>
module attributes {stable_mosaic.version = 11 : i64} {
  func.func @policy_net_kernel(%arg0: i32, %arg1: memref<4x16xf32, #tpu.memory_space<vmem>>, %arg2: memref<16x128xbf16, #tpu.memory_space<vmem>>, %arg3: memref<1x128xf32, #tpu.memory_space<vmem>>, %arg4: memref<128x32xbf16, #tpu.memory_space<vmem>>, %arg5: memref<1x32xf32, #tpu.memory_space<vmem>>, %arg6: memref<32x128xbf16, #tpu.memory_space<vmem>>, %arg7: memref<1x128xf32, #tpu.memory_space<vmem>>, %arg8: memref<4x8xf32, #tpu.memory_space<vmem>>) attributes {dimension_semantics = [#tpu.dimension_semantics<parallel>], iteration_bounds = array<i64: 1>, scalar_prefetch = 0 : i64, scratch_operands = 0 : i64, tpu.core_type = #tpu.core_type<tc>, window_params = [{transform_indices = @transform_0, window_bounds = array<i64: 4, 16>}, {pipeline_mode = #tpu.pipeline_mode<synchronous>, transform_indices = @transform_1, window_bounds = array<i64: 16, 128>}, {pipeline_mode = #tpu.pipeline_mode<synchronous>, transform_indices = @transform_2, window_bounds = array<i64: 1, 128>}, {pipeline_mode = #tpu.pipeline_mode<synchronous>, transform_indices = @transform_3, window_bounds = array<i64: 128, 32>}, {pipeline_mode = #tpu.pipeline_mode<synchronous>, transform_indices = @transform_4, window_bounds = array<i64: 1, 32>}, {pipeline_mode = #tpu.pipeline_mode<synchronous>, transform_indices = @transform_5, window_bounds = array<i64: 32, 128>}, {pipeline_mode = #tpu.pipeline_mode<synchronous>, transform_indices = @transform_6, window_bounds = array<i64: 1, 128>}, {transform_indices = @transform_7, window_bounds = array<i64: 4, 8>}]} {
    %c0 = arith.constant 0 : index
    %c0_0 = arith.constant 0 : index
    %0 = vector.load %arg1[%c0, %c0_0] : memref<4x16xf32, #tpu.memory_space<vmem>>, vector<4x16xf32>
    %1 = arith.truncf %0 : vector<4x16xf32> to vector<4x16xbf16>
    %c0_1 = arith.constant 0 : index
    %c0_2 = arith.constant 0 : index
    %2 = vector.load %arg2[%c0_1, %c0_2] : memref<16x128xbf16, #tpu.memory_space<vmem>>, vector<16x128xbf16>
    %cst = arith.constant dense<0.000000e+00> : vector<4x128xf32>
    %3 = tpu.matmul %1, %2, %cst {dimension_numbers = #tpu.dot_dimension_numbers<[1], [0], [0], [1], [0, 0, 1, 1], [], []>} : vector<4x16xbf16>, vector<16x128xbf16>, vector<4x128xf32> -> vector<4x128xf32>
    %c0_3 = arith.constant 0 : index
    %c0_4 = arith.constant 0 : index
    %4 = vector.load %arg3[%c0_3, %c0_4] : memref<1x128xf32, #tpu.memory_space<vmem>>, vector<1x128xf32>
    %5 = vector.broadcast %4 : vector<1x128xf32> to vector<4x128xf32>
    %6 = arith.addf %3, %5 : vector<4x128xf32>
    %cst_5 = arith.constant 0.000000e+00 : f32
    %7 = vector.broadcast %cst_5 : f32 to vector<4x128xf32>
    %8 = arith.maximumf %6, %7 : vector<4x128xf32>
    %9 = arith.truncf %8 : vector<4x128xf32> to vector<4x128xbf16>
    %c0_6 = arith.constant 0 : index
    %c0_7 = arith.constant 0 : index
    %10 = vector.load %arg4[%c0_6, %c0_7] : memref<128x32xbf16, #tpu.memory_space<vmem>>, vector<128x32xbf16>
    %cst_8 = arith.constant dense<0.000000e+00> : vector<4x32xf32>
    %11 = tpu.matmul %9, %10, %cst_8 {dimension_numbers = #tpu.dot_dimension_numbers<[1], [0], [0], [1], [0, 0, 1, 1], [], []>} : vector<4x128xbf16>, vector<128x32xbf16>, vector<4x32xf32> -> vector<4x32xf32>
    %c0_9 = arith.constant 0 : index
    %c0_10 = arith.constant 0 : index
    %12 = vector.load %arg5[%c0_9, %c0_10] : memref<1x32xf32, #tpu.memory_space<vmem>>, vector<1x32xf32>
    %13 = vector.broadcast %12 : vector<1x32xf32> to vector<4x32xf32>
    %14 = arith.addf %11, %13 : vector<4x32xf32>
    %cst_11 = arith.constant 0.000000e+00 : f32
    %15 = vector.broadcast %cst_11 : f32 to vector<4x32xf32>
    %16 = arith.maximumf %14, %15 : vector<4x32xf32>
    %17 = arith.truncf %16 : vector<4x32xf32> to vector<4x32xbf16>
    %c0_12 = arith.constant 0 : index
    %c0_13 = arith.constant 0 : index
    %18 = vector.load %arg6[%c0_12, %c0_13] : memref<32x128xbf16, #tpu.memory_space<vmem>>, vector<32x128xbf16>
    %cst_14 = arith.constant dense<0.000000e+00> : vector<4x128xf32>
    %19 = tpu.matmul %17, %18, %cst_14 {dimension_numbers = #tpu.dot_dimension_numbers<[1], [0], [0], [1], [0, 0, 1, 1], [], []>} : vector<4x32xbf16>, vector<32x128xbf16>, vector<4x128xf32> -> vector<4x128xf32>
    %c0_15 = arith.constant 0 : index
    %c0_16 = arith.constant 0 : index
    %20 = vector.load %arg7[%c0_15, %c0_16] : memref<1x128xf32, #tpu.memory_space<vmem>>, vector<1x128xf32>
    %21 = vector.broadcast %20 : vector<1x128xf32> to vector<4x128xf32>
    %22 = arith.addf %19, %21 : vector<4x128xf32>
    %cst_17 = arith.constant 0.000000e+00 : f32
    %23 = vector.broadcast %cst_17 : f32 to vector<4x128xf32>
    %24 = arith.maximumf %22, %23 : vector<4x128xf32>
    %25 = tpu.iota {dimensions = array<i32: 1>} : vector<4x128xi32>
    %c8_i32 = arith.constant 8 : i32
    %26 = vector.broadcast %c8_i32 : i32 to vector<4x128xi32>
    %27 = arith.cmpi slt, %25, %26 : vector<4x128xi32>
    %cst_18 = arith.constant 0xFF800000 : f32
    %28 = vector.broadcast %cst_18 : f32 to vector<4x128xf32>
    %29 = arith.select %27, %24, %28 : vector<4x128xi1>, vector<4x128xf32>
    %cst_19 = arith.constant dense<0xFF800000> : vector<4xf32>
    %30 = vector.multi_reduction <maximumf>, %29, %cst_19 [1] : vector<4x128xf32> to vector<4xf32>
    %31 = vector.shape_cast %30 : vector<4xf32> to vector<4x1xf32>
    %32 = vector.broadcast %31 : vector<4x1xf32> to vector<4x128xf32>
    %33 = arith.subf %29, %32 : vector<4x128xf32>
    %34 = math.exp %33 : vector<4x128xf32>
    %cst_20 = arith.constant dense<0.000000e+00> : vector<4xf32>
    %35 = vector.multi_reduction <add>, %34, %cst_20 [1] : vector<4x128xf32> to vector<4xf32>
    %36 = vector.shape_cast %35 : vector<4xf32> to vector<4x1xf32>
    %37 = vector.broadcast %36 : vector<4x1xf32> to vector<4x128xf32>
    %38 = arith.divf %34, %37 : vector<4x128xf32>
    %39 = vector.extract_strided_slice %38 {offsets = [0, 0], sizes = [4, 8], strides = [1, 1]} : vector<4x128xf32> to vector<4x8xf32>
    %c0_21 = arith.constant 0 : index
    %c0_22 = arith.constant 0 : index
    %40 = vector.load %arg8[%c0_21, %c0_22] : memref<4x8xf32, #tpu.memory_space<vmem>>, vector<4x8xf32>
    tpu.vector_store %arg8[%c0_21, %c0_22], %39 {strides = array<i32>} : memref<4x8xf32, #tpu.memory_space<vmem>>, vector<4x8xf32>,
    return
  }
  func.func @transform_0(%arg0: i32) -> (i32, i32) {
    %c0_i32 = arith.constant 0 : i32
    %c0_i32_0 = arith.constant 0 : i32
    return %arg0, %c0_i32 : i32, i32
  }
  func.func @transform_1(%arg0: i32) -> (i32, i32) {
    %c0_i32 = arith.constant 0 : i32
    %c0_i32_0 = arith.constant 0 : i32
    %c0_i32_1 = arith.constant 0 : i32
    return %c0_i32, %c0_i32_0 : i32, i32
  }
  func.func @transform_2(%arg0: i32) -> (i32, i32) {
    %c0_i32 = arith.constant 0 : i32
    %c0_i32_0 = arith.constant 0 : i32
    %c0_i32_1 = arith.constant 0 : i32
    return %c0_i32, %c0_i32_0 : i32, i32
  }
  func.func @transform_3(%arg0: i32) -> (i32, i32) {
    %c0_i32 = arith.constant 0 : i32
    %c0_i32_0 = arith.constant 0 : i32
    %c0_i32_1 = arith.constant 0 : i32
    return %c0_i32, %c0_i32_0 : i32, i32
  }
  func.func @transform_4(%arg0: i32) -> (i32, i32) {
    %c0_i32 = arith.constant 0 : i32
    %c0_i32_0 = arith.constant 0 : i32
    %c0_i32_1 = arith.constant 0 : i32
    return %c0_i32, %c0_i32_0 : i32, i32
  }
  func.func @transform_5(%arg0: i32) -> (i32, i32) {
    %c0_i32 = arith.constant 0 : i32
    %c0_i32_0 = arith.constant 0 : i32
    %c0_i32_1 = arith.constant 0 : i32
    return %c0_i32, %c0_i32_0 : i32, i32
  }
  func.func @transform_6(%arg0: i32) -> (i32, i32) {
    %c0_i32 = arith.constant 0 : i32
    %c0_i32_0 = arith.constant 0 : i32
    %c0_i32_1 = arith.constant 0 : i32
    return %c0_i32, %c0_i32_0 : i32, i32
  }
  func.func @transform_7(%arg0: i32) -> (i32, i32) {
    %c0_i32 = arith.constant 0 : i32
    %c0_i32_0 = arith.constant 0 : i32
    return %arg0, %c0_i32 : i32, i32
  }
}

</mosaic_0001>

<llo_original>
// kernel: tpu_custom_call.1
$region0: #{tpu_custom_call.1}
  #allocation0 [shape = 'u32[]', space=smem, size = 0x4, offset = 0x4, fixed_abs, tag = 'smem constant byte address 0x4 - core index']
  #allocation1 [shape = 'u32[144,128]{1,0:T(1,128)}', space=vmem, size = 0x12000, scoped, tag = 'internal scratch']
  %s0 = inlined_call_operand.vmem [shape: f32[4,16], index: 0, kind: input, shape index: {}]
  %s1 = inlined_call_operand.vmem [shape: bf16[16,128], index: 1, kind: input, shape index: {}]
  %s2 = inlined_call_operand.vmem [shape: f32[1,128], index: 2, kind: input, shape index: {}]
  %s3 = inlined_call_operand.vmem [shape: bf16[128,32], index: 3, kind: input, shape index: {}]
  %s4 = inlined_call_operand.vmem [shape: f32[1,32], index: 4, kind: input, shape index: {}]
  %s5 = inlined_call_operand.vmem [shape: bf16[32,128], index: 5, kind: input, shape index: {}]
  %s6 = inlined_call_operand.vmem [shape: f32[1,128], index: 6, kind: input, shape index: {}]
  %s7 = inlined_call_operand.hbm [shape: f32[4,8], index: 7, kind: output, shape index: {}]
  %s8 = sld [smem:[#allocation0]]
  $region38: #{tpu_custom_call.1} parent=0
    _
  %s10 = ssub.s32 1, %s8
  %s11 = scalar_select 0, %s10, %s8
  $region1: #{tpu_custom_call.1} parent=0
    #allocation2 [shape = 'u8[2048]{0}', space=vmem, size = 0x800, scoped, tag = 'output window, operand 0, single buffered']
    #allocation3 [shape = 's32[1]{0}', space=sflag, size = 0x4, scoped, tag = 'scoped memory for tpu_custom_call.1']
    %12 = vsyncpa [#allocation3], 0
    // Predicated region
    $region2: #{tpu_custom_call.1} parent=1 // pred_check
      _
    $region3: #{tpu_custom_call.1} parent=1 // pred_check_branch
      %14 = sbr.rel (0) target = $region5
    $region4: #{tpu_custom_call.1} parent=1 // pred_region
      _
    $region5: #{tpu_custom_call.1} parent=1 // pred_fallthru
      _
    // Predicated region
    $region6: #{tpu_custom_call.1} parent=1 // pred_check
      _
    $region7: #{tpu_custom_call.1} parent=1 // pred_check_branch
      %16 = sbr.rel (0) target = $region9
    $region8: #{tpu_custom_call.1} parent=1 // pred_region
      _
    $region9: #{tpu_custom_call.1} parent=1 // pred_fallthru
      _
    // Predicated region
    $region10: #{tpu_custom_call.1} parent=1 // pred_check
      _
    $region11: #{tpu_custom_call.1} parent=1 // pred_check_branch
      %18 = sbr.rel (0) target = $region13
    $region12: #{tpu_custom_call.1} parent=1 // pred_region
      _
    $region13: #{tpu_custom_call.1} parent=1 // pred_fallthru
      _
    // Predicated region
    $region14: #{tpu_custom_call.1} parent=1 // pred_check
      _
    $region15: #{tpu_custom_call.1} parent=1 // pred_check_branch
      %20 = sbr.rel (0) target = $region17
    $region16: #{tpu_custom_call.1} parent=1 // pred_region
      _
    $region17: #{tpu_custom_call.1} parent=1 // pred_fallthru
      _
    // Predicated region
    $region18: #{tpu_custom_call.1} parent=1 // pred_check
      _
    $region19: #{tpu_custom_call.1} parent=1 // pred_check_branch
      %22 = sbr.rel (0) target = $region21
    $region20: #{tpu_custom_call.1} parent=1 // pred_region
      _
    $region21: #{tpu_custom_call.1} parent=1 // pred_fallthru
      _
    // Predicated region
    $region22: #{tpu_custom_call.1} parent=1 // pred_check
      _
    $region23: #{tpu_custom_call.1} parent=1 // pred_check_branch
      %24 = sbr.rel (0) target = $region25
    $region24: #{tpu_custom_call.1} parent=1 // pred_region
      _
    $region25: #{tpu_custom_call.1} parent=1 // pred_fallthru
      _
    // Predicated region
    $region26: #{tpu_custom_call.1} parent=1 // pred_check
      _
    $region27: #{tpu_custom_call.1} parent=1 // pred_check_branch
      %26 = sbr.rel (0) target = $region29
    $region28: #{tpu_custom_call.1} parent=1 // pred_region
      _
    $region29: #{tpu_custom_call.1} parent=1 // pred_fallthru
      _
    %v28 = vld [vmem:[%s0] sm:$0xf]
    %v29 = vpack.c.bf16 %v28, %v28
    %v30 = vld [vmem:[%s1] sm:$0xf]
    %v31 = vld [vmem:[%s1 + $0x4] sm:$0xf]
    %v32 = vld [vmem:[%s2] sm:$0x1]
    %v34 = vlaneseq
    %v35 = vshrl.u32 %v34, 7
    %v36 = vsub.s32 0, %v35
    %v37 = vrot.slane %v32, %v36
    %v41 = vunpack.c.l.b16 %v30
    %v42 = vunpack.c.l.b16 %v31
    %v43 = vpack.c.b16 %v42, %v41
    %vm45 = vcmask 130048
    %v47 = vsel %vm45, %v29, 0
    %49 = vmatprep.subr.bf16.mxu0 0
    %50 = vmatpush1.bf16.msra.mxu0 0
    %51 = vmatprep.subr.bf16.mxu0 0
    %52 = vmatpush1.bf16.msra.mxu0 0
    %53 = vmatprep.subr.bf16.mxu0 0
    %54 = vmatpush1.bf16.msra.mxu0 0
    %55 = vmatprep.subr.bf16.mxu0 0
    %56 = vmatpush1.bf16.msra.mxu0 0
    %57 = vmatprep.subr.bf16.mxu0 0
    %58 = vmatpush1.bf16.msra.mxu0 0
    %59 = vmatprep.subr.bf16.mxu0 0
    %60 = vmatpush1.bf16.msra.mxu0 0
    %61 = vmatprep.subr.bf16.mxu0 0
    %62 = vmatpush1.bf16.msra.mxu0 0
    %63 = vmatprep.subr.bf16.mxu0 0
    %64 = vmatpush1.bf16.msra.mxu0 %v43
    %65 = vmatprep.subr.bf16.mxu0 0
    %66 = vmatpush2.bf16.msra.mxu0 0
    %67 = vmatprep.subr.bf16.mxu0 0
    %68 = vmatpush2.bf16.msra.mxu0 0
    %69 = vmatprep.subr.bf16.mxu0 0
    %70 = vmatpush2.bf16.msra.mxu0 0
    %71 = vmatprep.subr.bf16.mxu0 0
    %72 = vmatpush2.bf16.msra.mxu0 0
    %73 = vmatprep.subr.bf16.mxu0 0
    %74 = vmatpush2.bf16.msra.mxu0 0
    %75 = vmatprep.subr.bf16.mxu0 0
    %76 = vmatpush2.bf16.msra.mxu0 0
    %77 = vmatprep.subr.bf16.mxu0 0
    %78 = vmatpush2.bf16.msra.mxu0 0
    %79 = vmatprep.subr.bf16.mxu0 0
    %80 = vmatpush2.bf16.msra.mxu0 0
    %81 = vmatprep.mubr.bf16.mxu0 0
    %82 = vmatmul.mubr.bf16.gmra.mxu0 %v47
    %v83 = vpop.f32.mrf.mxu0
    %v84 = vadd.f32 %v37, %v83
    %v85 = vpop.f32.mrf.mxu0
    %v86 = vpop.f32.mrf.mxu0
    %v87 = vpop.f32.mrf.mxu0
    %88 = vdwg.mxu0
    %v89 = vmax.f32 %v84, 0.0
    %v90 = vpack.c.bf16 %v89, %v89
    %v91 = vld [vmem:[%s3] sm:$0xf]
    %v92 = vld [vmem:[%s3 + $0x4] sm:$0xf]
    %v93 = vld [vmem:[%s3 + $0x8] sm:$0xf]
    %v94 = vld [vmem:[%s3 + $0xc] sm:$0xf]
    %v95 = vld [vmem:[%s3 + $0x10] sm:$0xf]
    %v96 = vld [vmem:[%s3 + $0x14] sm:$0xf]
    %v97 = vld [vmem:[%s3 + $0x18] sm:$0xf]
    %v98 = vld [vmem:[%s3 + $0x1c] sm:$0xf]
    %v99 = vld [vmem:[%s3 + $0x20] sm:$0xf]
    %v100 = vld [vmem:[%s3 + $0x24] sm:$0xf]
    %v101 = vld [vmem:[%s3 + $0x28] sm:$0xf]
    %v102 = vld [vmem:[%s3 + $0x2c] sm:$0xf]
    %v103 = vld [vmem:[%s3 + $0x30] sm:$0xf]
    %v104 = vld [vmem:[%s3 + $0x34] sm:$0xf]
    %v105 = vld [vmem:[%s3 + $0x38] sm:$0xf]
    %v106 = vld [vmem:[%s3 + $0x3c] sm:$0xf]
    %v107 = vld [vmem:[%s4] sm:$0x1]
    %v109 = vlaneseq
    %v110 = vshrl.u32 %v109, 7
    %v111 = vsub.s32 0, %v110
    %v112 = vrot.slane %v107, %v111
    %v130 = vunpack.c.l.b16 %v91
    %v131 = vunpack.c.l.b16 %v92
    %v132 = vunpack.c.l.b16 %v93
    %v133 = vunpack.c.l.b16 %v94
    %v134 = vunpack.c.l.b16 %v95
    %v135 = vunpack.c.l.b16 %v96
    %v136 = vunpack.c.l.b16 %v97
    %v137 = vunpack.c.l.b16 %v98
    %v138 = vunpack.c.l.b16 %v99
    %v139 = vunpack.c.l.b16 %v100
    %v140 = vunpack.c.l.b16 %v101
    %v141 = vunpack.c.l.b16 %v102
    %v142 = vunpack.c.l.b16 %v103
    %v143 = vunpack.c.l.b16 %v104
    %v144 = vunpack.c.l.b16 %v105
    %v145 = vunpack.c.l.b16 %v106
    %v146 = vpack.c.b16 %v131, %v130
    %v147 = vpack.c.b16 %v133, %v132
    %v148 = vpack.c.b16 %v135, %v134
    %v149 = vpack.c.b16 %v137, %v136
    %v150 = vpack.c.b16 %v139, %v138
    %v151 = vpack.c.b16 %v141, %v140
    %v152 = vpack.c.b16 %v143, %v142
    %v153 = vpack.c.b16 %v145, %v144
    %162 = vmatprep.subr.bf16.mxu0 0
    %163 = vmatpush1.bf16.msra.mxu0 %v153
    %164 = vmatprep.subr.bf16.mxu0 0
    %165 = vmatpush1.bf16.msra.mxu0 %v152
    %166 = vmatprep.subr.bf16.mxu0 0
    %167 = vmatpush1.bf16.msra.mxu0 %v151
    %168 = vmatprep.subr.bf16.mxu0 0
    %169 = vmatpush1.bf16.msra.mxu0 %v150
    %170 = vmatprep.subr.bf16.mxu0 0
    %171 = vmatpush1.bf16.msra.mxu0 %v149
    %172 = vmatprep.subr.bf16.mxu0 0
    %173 = vmatpush1.bf16.msra.mxu0 %v148
    %174 = vmatprep.subr.bf16.mxu0 0
    %175 = vmatpush1.bf16.msra.mxu0 %v147
    %176 = vmatprep.subr.bf16.mxu0 0
    %177 = vmatpush1.bf16.msra.mxu0 %v146
    %178 = vmatprep.subr.bf16.mxu0 0
    %179 = vmatpush2.bf16.msra.mxu0 0
    %180 = vmatprep.subr.bf16.mxu0 0
    %181 = vmatpush2.bf16.msra.mxu0 0
    %182 = vmatprep.subr.bf16.mxu0 0
    %183 = vmatpush2.bf16.msra.mxu0 0
    %184 = vmatprep.subr.bf16.mxu0 0
    %185 = vmatpush2.bf16.msra.mxu0 0
    %186 = vmatprep.subr.bf16.mxu0 0
    %187 = vmatpush2.bf16.msra.mxu0 0
    %188 = vmatprep.subr.bf16.mxu0 0
    %189 = vmatpush2.bf16.msra.mxu0 0
    %190 = vmatprep.subr.bf16.mxu0 0
    %191 = vmatpush2.bf16.msra.mxu0 0
    %192 = vmatprep.subr.bf16.mxu0 0
    %193 = vmatpush2.bf16.msra.mxu0 0
    %194 = vmatprep.mubr.bf16.mxu0 0
    %195 = vmatmul.mubr.bf16.gmra.mxu0 %v90
    %v196 = vpop.f32.mrf.mxu0
    %v197 = vadd.f32 %v112, %v196
    %v198 = vpop.f32.mrf.mxu0
    %v199 = vpop.f32.mrf.mxu0
    %v200 = vpop.f32.mrf.mxu0
    %201 = vdwg.mxu0
    %v202 = vmax.f32 %v197, 0.0
    %v203 = vpack.c.bf16 %v202, %v202
    %v204 = vld [vmem:[%s5] sm:$0xf]
    %v205 = vld [vmem:[%s5 + $0x4] sm:$0xf]
    %v206 = vld [vmem:[%s5 + $0x8] sm:$0xf]
    %v207 = vld [vmem:[%s5 + $0xc] sm:$0xf]
    %v208 = vld [vmem:[%s6] sm:$0x1]
    %v210 = vlaneseq
    %v211 = vshrl.u32 %v210, 7
    %v212 = vsub.s32 0, %v211
    %v213 = vrot.slane %v208, %v212
    %v219 = vunpack.c.l.b16 %v204
    %v220 = vunpack.c.l.b16 %v205
    %v221 = vunpack.c.l.b16 %v206
    %v222 = vunpack.c.l.b16 %v207
    %v223 = vpack.c.b16 %v220, %v219
    %v224 = vpack.c.b16 %v222, %v221
    %vm227 = vcmask 261120
    %v229 = vsel %vm227, %v203, 0
    %231 = vmatprep.subr.bf16.mxu0 0
    %232 = vmatpush1.bf16.msra.mxu0 0
    %233 = vmatprep.subr.bf16.mxu0 0
    %234 = vmatpush1.bf16.msra.mxu0 0
    %235 = vmatprep.subr.bf16.mxu0 0
    %236 = vmatpush1.bf16.msra.mxu0 0
    %237 = vmatprep.subr.bf16.mxu0 0
    %238 = vmatpush1.bf16.msra.mxu0 0
    %239 = vmatprep.subr.bf16.mxu0 0
    %240 = vmatpush1.bf16.msra.mxu0 0
    %241 = vmatprep.subr.bf16.mxu0 0
    %242 = vmatpush1.bf16.msra.mxu0 0
    %243 = vmatprep.subr.bf16.mxu0 0
    %244 = vmatpush1.bf16.msra.mxu0 %v224
    %245 = vmatprep.subr.bf16.mxu0 0
    %246 = vmatpush1.bf16.msra.mxu0 %v223
    %247 = vmatprep.subr.bf16.mxu0 0
    %248 = vmatpush2.bf16.msra.mxu0 0
    %249 = vmatprep.subr.bf16.mxu0 0
    %250 = vmatpush2.bf16.msra.mxu0 0
    %251 = vmatprep.subr.bf16.mxu0 0
    %252 = vmatpush2.bf16.msra.mxu0 0
    %253 = vmatprep.subr.bf16.mxu0 0
    %254 = vmatpush2.bf16.msra.mxu0 0
    %255 = vmatprep.subr.bf16.mxu0 0
    %256 = vmatpush2.bf16.msra.mxu0 0
    %257 = vmatprep.subr.bf16.mxu0 0
    %258 = vmatpush2.bf16.msra.mxu0 0
    %259 = vmatprep.subr.bf16.mxu0 0
    %260 = vmatpush2.bf16.msra.mxu0 0
    %261 = vmatprep.subr.bf16.mxu0 0
    %262 = vmatpush2.bf16.msra.mxu0 0
    %263 = vmatprep.mubr.bf16.mxu0 0
    %264 = vmatmul.mubr.bf16.gmra.mxu0 %v229
    %v265 = vpop.f32.mrf.mxu0
    %v266 = vadd.f32 %v213, %v265
    %v267 = vpop.f32.mrf.mxu0
    %v268 = vpop.f32.mrf.mxu0
    %v269 = vpop.f32.mrf.mxu0
    %270 = vdwg.mxu0
    %v271 = vmax.f32 %v266, 0.0
    %v272 = vlaneseq
    %v273 = vand.u32 %v272, 127
    %vm274 = vcmp.lt.s32.totalorder %v273, 8
    %v275 = vsel %vm274, %v271, -inf
    %vm276 = vcmask 1043456
    %v277 = vsel %vm276, %v275, -inf
    %278 = vmax.xlane.f32.xlu0 %v277
    %v279 = vpop.xlane.xlu0 %278
    %v280 = vsub.f32 %v275, %v279
    %v281 = vmul.f32 %v280, 1.442695
    %v282 = vpow.pop %v281
    %v283 = vsel %vm276, %v282, 0.0
    %284 = vadd.xlane.f32.xlu0 %v283
    %v285 = vpop.xlane.xlu0 %284
    %v286 = vrcp.pop %v285
    %v287 = vmul.f32 %v282, %v286
    %vm288 = vcmask 60416
    %289 = vst.msk [vmem:[#allocation2] sm:$0xf] %vm288, %v287
    // Predicated region
    $region30: #{tpu_custom_call.1} parent=1 // pred_check
      _
    $region31: #{tpu_custom_call.1} parent=1 // pred_check_branch
      %291 = sbr.rel (0) target = $region33
    $region32: #{tpu_custom_call.1} parent=1 // pred_region
      %s293 = ssub.s32 64, 64
      %294 = vsyncadd [#allocation3], %s293
      %s296 = sshll.u32 [#allocation2], 4
      %s297 = int_to_ptr.vmem [resolvable:$true] %s296
      %299 = dma.vmem_to_hbm [thread:$0]  %s297, 64, %s7, [#allocation3]
    $region33: #{tpu_custom_call.1} parent=1 // pred_fallthru
      _
    // Predicated region
    $region34: #{tpu_custom_call.1} parent=1 // pred_check
      _
    $region35: #{tpu_custom_call.1} parent=1 // pred_check_branch
      %301 = sbr.rel (0) target = $region37
    $region36: #{tpu_custom_call.1} parent=1 // pred_region
      %302 = dma.done [#allocation3], 64
    $region37: #{tpu_custom_call.1} parent=1 // pred_fallthru
      _
    %303 = vsyncpa [#allocation3], 1

</llo_original>
